<compile_context>
chip_gen: v7x
topology: tpu7x:2x2x1
jax: 0.10.0
libtpu: 0.0.40
codegen_flags: <defaults>
</compile_context>

<pallas_src>
import jax
import jax.numpy as jnp
from jax.experimental import pallas as pl
from jax.experimental.pallas import tpu as pltpu

LANE = 128          # batch lives on lanes
F_PAD = 128         # padded hidden width (20 / 100 / 20 -> 128)
IN_PAD = 16         # padded input-feature rows (4 -> 16, one bf16 sublane band)
OUT_PAD = 8         # padded output-logit rows (3 -> 8, one f32 sublane band)
N_LAYERS = 4
DIMS = [(4, 20), (20, 100), (100, 20), (20, 3)]   # (fan_in, fan_out) per layer
IN_FEATURES = 4
OUT_FEATURES = 3


def iris_mlp_kernel(x_ref, w1_ref, w_ref, b_ref, o_ref):
    """Fused 4-layer MLP on one transposed activation tile.

    x_ref : (IN_PAD, TILE_B)   x^T tile (features on sublanes, batch on lanes)
    w1_ref: (F_PAD, IN_PAD)    W1^T zero-padded, (out, in) layout
    w_ref : (3, F_PAD, F_PAD)  W2^T..W4^T zero-padded, (out, in) layout
    b_ref : (4, F_PAD, 1)      f32 biases as zero-padded column vectors
    o_ref : (OUT_PAD, TILE_B)  logits^T (real logits in rows 0:3)
    """
    wdt = w_ref.dtype
    # Layer 1: (128, 16) @ (16, TILE_B) -> f32 (128, TILE_B).
    h = jnp.dot(w1_ref[...], x_ref[...], preferred_element_type=jnp.float32)
    h = jnp.maximum(h + b_ref[0], 0.0)
    # Layers 2-3: (128,128) @ (128, TILE_B) + bias + ReLU.  Zero-padded
    # rows/cols stay exactly zero through bias-add (padded bias = 0) and ReLU.
    for j in range(N_LAYERS - 2):
        h = jnp.dot(w_ref[j], h.astype(wdt), preferred_element_type=jnp.float32)
        h = jnp.maximum(h + b_ref[j + 1], 0.0)
    # Layer 4 (no ReLU): only the first OUT_PAD output rows are needed.
    h = jnp.dot(w_ref[N_LAYERS - 2, :OUT_PAD, :], h.astype(wdt),
                preferred_element_type=jnp.float32)
    o_ref[...] = (h + b_ref[N_LAYERS - 1, :OUT_PAD, :]).astype(o_ref.dtype)


def _round_up(n, m):
    return ((n + m - 1) // m) * m


def pack_params(params, dtype=jnp.bfloat16):
    """Pack per-layer weights/biases into small zero-padded resident arrays.

    Returns:
      w1_packed: (F_PAD, IN_PAD)        W1^T, weight dtype
      w_packed : (3, F_PAD, F_PAD)      W2^T..W4^T, weight dtype
      b_packed : (N_LAYERS, F_PAD, 1)   f32 biases (column vectors)
    """
    fi0, fo0 = DIMS[0]
    w1_packed = jnp.zeros((F_PAD, IN_PAD), dtype)
    w1_packed = w1_packed.at[:fo0, :fi0].set(params["w1"].T.astype(dtype))

    w_packed = jnp.zeros((N_LAYERS - 1, F_PAD, F_PAD), dtype)
    for layer in range(1, N_LAYERS):
        fi, fo = DIMS[layer]
        w_packed = w_packed.at[layer - 1, :fo, :fi].set(
            params[f"w{layer + 1}"].T.astype(dtype))

    b_packed = jnp.zeros((N_LAYERS, F_PAD, 1), jnp.float32)
    for i, (_, fo) in enumerate(DIMS):
        b_packed = b_packed.at[i, :fo, 0].set(
            params[f"b{i + 1}"].reshape(-1).astype(jnp.float32))
    return w1_packed, w_packed, b_packed


def iris_forward(x, w1_packed, w_packed, b_packed, *, tile_b=2048):
    """x: (batch, 4) float32. Returns (batch, 3) float32 logits."""
    batch = x.shape[0]
    wdt = w_packed.dtype

    # Batch tiling: batch lives on lanes, so align to 128.  Pick the number of
    # grid steps first, then the tile, so padding waste stays <128 rows/step.
    b_pad = _round_up(batch, LANE)
    n_steps = max(1, pl.cdiv(b_pad, tile_b))
    if n_steps == 1 and b_pad > LANE:
        n_steps = 2          # v7x megacore: >=2 parallel steps to use both TCs
    tile = _round_up(pl.cdiv(b_pad, n_steps), LANE)
    b_pad = n_steps * tile

    # Build x^T zero-padded to (IN_PAD, b_pad) in the weight dtype (the kernel
    # casts activations to the weight dtype before each dot anyway, so storing
    # bf16 here is numerically identical and halves the input DMA).
    xT = jnp.zeros((IN_PAD, b_pad), wdt)
    xT = xT.at[:IN_FEATURES, :batch].set(x.astype(wdt).T)

    outT = pl.pallas_call(
        iris_mlp_kernel,
        out_shape=jax.ShapeDtypeStruct((OUT_PAD, b_pad), jnp.float32),
        grid=(n_steps,),
        in_specs=[
            # activation tile streams over the batch grid (lane-dense)
            pl.BlockSpec((IN_PAD, tile), lambda i: (0, i)),
            # packed weights / biases stay VMEM-resident (same block each step)
            pl.BlockSpec((F_PAD, IN_PAD), lambda i: (0, 0)),
            pl.BlockSpec((N_LAYERS - 1, F_PAD, F_PAD), lambda i: (0, 0, 0)),
            pl.BlockSpec((N_LAYERS, F_PAD, 1), lambda i: (0, 0, 0)),
        ],
        out_specs=pl.BlockSpec((OUT_PAD, tile), lambda i: (0, i)),
        compiler_params=pltpu.CompilerParams(
            # independent batch steps -> shard across TCs on v7x
            dimension_semantics=("parallel",)),
    )(xT, w1_packed, w_packed, b_packed)

    # Strip the zero-padded logit rows and the batch-padding columns.
    # (Padded batch columns carry bias-propagated garbage; they are never used.)
    return outT[:OUT_FEATURES, :batch].T


def init_params(key):
    """Deterministic init mimicking nn.Linear's U(-1/sqrt(fan_in), 1/sqrt(fan_in)).
    Weights stored as (in, out) = transpose of PyTorch's (out, in)."""
    params = {}
    keys = jax.random.split(key, 2 * len(DIMS))
    for i, (fan_in, fan_out) in enumerate(DIMS):
        bound = 1.0 / jnp.sqrt(jnp.float32(fan_in))
        params[f"w{i + 1}"] = jax.random.uniform(
            keys[2 * i], (fan_in, fan_out), minval=-bound, maxval=bound,
            dtype=jnp.float32)
        params[f"b{i + 1}"] = jax.random.uniform(
            keys[2 * i + 1], (1, fan_out), minval=-bound, maxval=bound,
            dtype=jnp.float32)
    return params


def reference_forward(x, params, weight_dtype=None):
    """Pure-JAX reference.  If weight_dtype is set, the matmul operands are
    rounded to that dtype (matching the kernel's bf16 MXU path); biases and
    accumulation stay f32."""
    h = x.astype(jnp.float32)
    for i in range(N_LAYERS):
        w = params[f"w{i + 1}"]
        b = params[f"b{i + 1}"]
        if weight_dtype is not None:
            w = w.astype(weight_dtype).astype(jnp.float32)
            h = h.astype(weight_dtype).astype(jnp.float32)
        h = jnp.dot(h, w, preferred_element_type=jnp.float32) + b
        if i < N_LAYERS - 1:
            h = jnp.maximum(h, 0.0)
    return h


if __name__ == "__main__":
    key = jax.random.PRNGKey(0)
    pkey, xkey = jax.random.split(key)

    params = init_params(pkey)
    # bf16 weights by default (MXU-native on v5e/v6e/v7x); f32 bias + accumulation.
    w1_p, w_p, b_p = pack_params(params, dtype=jnp.bfloat16)

    x = jax.random.normal(xkey, (8, 4), dtype=jnp.float32)  # batch=8 iris samples

    out = jax.jit(iris_forward)(x, w1_p, w_p, b_p)
    out = jax.block_until_ready(out)
    assert out.shape == (8, 3)

    # Tight check: reference applies identical bf16 rounding to matmul operands.
    ref_bf16 = reference_forward(x, params, weight_dtype=jnp.bfloat16)
    assert jnp.allclose(out, ref_bf16, atol=1e-3, rtol=1e-3), \
        float(jnp.max(jnp.abs(out - ref_bf16)))

    # Loose sanity check against the pure-f32 module semantics.
    ref_f32 = reference_forward(x, params)
    assert jnp.allclose(out, ref_f32, atol=1e-1, rtol=1e-1), \
        float(jnp.max(jnp.abs(out - ref_f32)))

    print("KERNEL_OK")
</pallas_src>

<mosaic_0001>
module attributes {stable_mosaic.version = 11 : i64} {
  func.func @iris_mlp_kernel(%arg0: i32, %arg1: memref<16x128xbf16, #tpu.memory_space<vmem>>, %arg2: memref<128x16xbf16, #tpu.memory_space<vmem>>, %arg3: memref<3x128x128xbf16, #tpu.memory_space<vmem>>, %arg4: memref<4x128x1xf32, #tpu.memory_space<vmem>>, %arg5: memref<8x128xf32, #tpu.memory_space<vmem>>) attributes {dimension_semantics = [#tpu.dimension_semantics<parallel>], iteration_bounds = array<i64: 1>, scalar_prefetch = 0 : i64, scratch_operands = 0 : i64, tpu.core_type = #tpu.core_type<tc>, window_params = [{transform_indices = @transform_0, window_bounds = array<i64: 16, 128>}, {pipeline_mode = #tpu.pipeline_mode<synchronous>, transform_indices = @transform_1, window_bounds = array<i64: 128, 16>}, {pipeline_mode = #tpu.pipeline_mode<synchronous>, transform_indices = @transform_2, window_bounds = array<i64: 3, 128, 128>}, {pipeline_mode = #tpu.pipeline_mode<synchronous>, transform_indices = @transform_3, window_bounds = array<i64: 4, 128, 1>}, {transform_indices = @transform_4, window_bounds = array<i64: 8, 128>}]} {
    %c0 = arith.constant 0 : index
    %c0_0 = arith.constant 0 : index
    %0 = vector.load %arg2[%c0, %c0_0] : memref<128x16xbf16, #tpu.memory_space<vmem>>, vector<128x16xbf16>
    %c0_1 = arith.constant 0 : index
    %c0_2 = arith.constant 0 : index
    %1 = vector.load %arg1[%c0_1, %c0_2] : memref<16x128xbf16, #tpu.memory_space<vmem>>, vector<16x128xbf16>
    %cst = arith.constant dense<0.000000e+00> : vector<128x128xf32>
    %2 = tpu.matmul %0, %1, %cst {dimension_numbers = #tpu.dot_dimension_numbers<[1], [0], [0], [1], [0, 0, 1, 1], [], []>} : vector<128x16xbf16>, vector<16x128xbf16>, vector<128x128xf32> -> vector<128x128xf32>
    %c0_3 = arith.constant 0 : index
    %c0_4 = arith.constant 0 : index
    %c0_5 = arith.constant 0 : index
    %3 = vector.load %arg4[%c0_3, %c0_4, %c0_5] : memref<4x128x1xf32, #tpu.memory_space<vmem>>, vector<1x128x1xf32>
    %4 = vector.shape_cast %3 : vector<1x128x1xf32> to vector<128x1xf32>
    %5 = vector.broadcast %4 : vector<128x1xf32> to vector<128x128xf32>
    %6 = arith.addf %2, %5 : vector<128x128xf32>
    %cst_6 = arith.constant 0.000000e+00 : f32
    %7 = vector.broadcast %cst_6 : f32 to vector<128x128xf32>
    %8 = arith.maximumf %6, %7 : vector<128x128xf32>
    %c0_7 = arith.constant 0 : index
    %c0_8 = arith.constant 0 : index
    %c0_9 = arith.constant 0 : index
    %9 = vector.load %arg3[%c0_7, %c0_8, %c0_9] : memref<3x128x128xbf16, #tpu.memory_space<vmem>>, vector<1x128x128xbf16>
    %10 = vector.shape_cast %9 : vector<1x128x128xbf16> to vector<128x128xbf16>
    %11 = arith.truncf %8 : vector<128x128xf32> to vector<128x128xbf16>
    %cst_10 = arith.constant dense<0.000000e+00> : vector<128x128xf32>
    %12 = tpu.matmul %10, %11, %cst_10 {dimension_numbers = #tpu.dot_dimension_numbers<[1], [0], [0], [1], [0, 0, 1, 1], [], []>} : vector<128x128xbf16>, vector<128x128xbf16>, vector<128x128xf32> -> vector<128x128xf32>
    %c1 = arith.constant 1 : index
    %c0_11 = arith.constant 0 : index
    %c0_12 = arith.constant 0 : index
    %13 = vector.load %arg4[%c1, %c0_11, %c0_12] : memref<4x128x1xf32, #tpu.memory_space<vmem>>, vector<1x128x1xf32>
    %14 = vector.shape_cast %13 : vector<1x128x1xf32> to vector<128x1xf32>
    %15 = vector.broadcast %14 : vector<128x1xf32> to vector<128x128xf32>
    %16 = arith.addf %12, %15 : vector<128x128xf32>
    %cst_13 = arith.constant 0.000000e+00 : f32
    %17 = vector.broadcast %cst_13 : f32 to vector<128x128xf32>
    %18 = arith.maximumf %16, %17 : vector<128x128xf32>
    %c1_14 = arith.constant 1 : index
    %c0_15 = arith.constant 0 : index
    %c0_16 = arith.constant 0 : index
    %19 = vector.load %arg3[%c1_14, %c0_15, %c0_16] : memref<3x128x128xbf16, #tpu.memory_space<vmem>>, vector<1x128x128xbf16>
    %20 = vector.shape_cast %19 : vector<1x128x128xbf16> to vector<128x128xbf16>
    %21 = arith.truncf %18 : vector<128x128xf32> to vector<128x128xbf16>
    %cst_17 = arith.constant dense<0.000000e+00> : vector<128x128xf32>
    %22 = tpu.matmul %20, %21, %cst_17 {dimension_numbers = #tpu.dot_dimension_numbers<[1], [0], [0], [1], [0, 0, 1, 1], [], []>} : vector<128x128xbf16>, vector<128x128xbf16>, vector<128x128xf32> -> vector<128x128xf32>
    %c2 = arith.constant 2 : index
    %c0_18 = arith.constant 0 : index
    %c0_19 = arith.constant 0 : index
    %23 = vector.load %arg4[%c2, %c0_18, %c0_19] : memref<4x128x1xf32, #tpu.memory_space<vmem>>, vector<1x128x1xf32>
    %24 = vector.shape_cast %23 : vector<1x128x1xf32> to vector<128x1xf32>
    %25 = vector.broadcast %24 : vector<128x1xf32> to vector<128x128xf32>
    %26 = arith.addf %22, %25 : vector<128x128xf32>
    %cst_20 = arith.constant 0.000000e+00 : f32
    %27 = vector.broadcast %cst_20 : f32 to vector<128x128xf32>
    %28 = arith.maximumf %26, %27 : vector<128x128xf32>
    %c2_21 = arith.constant 2 : index
    %c0_22 = arith.constant 0 : index
    %c0_23 = arith.constant 0 : index
    %29 = vector.load %arg3[%c2_21, %c0_22, %c0_23] : memref<3x128x128xbf16, #tpu.memory_space<vmem>>, vector<1x8x128xbf16>
    %30 = vector.shape_cast %29 : vector<1x8x128xbf16> to vector<8x128xbf16>
    %31 = arith.truncf %28 : vector<128x128xf32> to vector<128x128xbf16>
    %cst_24 = arith.constant dense<0.000000e+00> : vector<8x128xf32>
    %32 = tpu.matmul %30, %31, %cst_24 {dimension_numbers = #tpu.dot_dimension_numbers<[1], [0], [0], [1], [0, 0, 1, 1], [], []>} : vector<8x128xbf16>, vector<128x128xbf16>, vector<8x128xf32> -> vector<8x128xf32>
    %c3 = arith.constant 3 : index
    %c0_25 = arith.constant 0 : index
    %c0_26 = arith.constant 0 : index
    %33 = vector.load %arg4[%c3, %c0_25, %c0_26] : memref<4x128x1xf32, #tpu.memory_space<vmem>>, vector<1x8x1xf32>
    %34 = vector.shape_cast %33 : vector<1x8x1xf32> to vector<8x1xf32>
    %35 = vector.broadcast %34 : vector<8x1xf32> to vector<8x128xf32>
    %36 = arith.addf %32, %35 : vector<8x128xf32>
    %c0_27 = arith.constant 0 : index
    %c0_28 = arith.constant 0 : index
    %37 = vector.load %arg5[%c0_27, %c0_28] : memref<8x128xf32, #tpu.memory_space<vmem>>, vector<8x128xf32>
    tpu.vector_store %arg5[%c0_27, %c0_28], %36 {strides = array<i32>} : memref<8x128xf32, #tpu.memory_space<vmem>>, vector<8x128xf32>,
    return
  }
  func.func @transform_0(%arg0: i32) -> (i32, i32) {
    %c0_i32 = arith.constant 0 : i32
    %c0_i32_0 = arith.constant 0 : i32
    return %c0_i32, %arg0 : i32, i32
  }
  func.func @transform_1(%arg0: i32) -> (i32, i32) {
    %c0_i32 = arith.constant 0 : i32
    %c0_i32_0 = arith.constant 0 : i32
    %c0_i32_1 = arith.constant 0 : i32
    return %c0_i32, %c0_i32_0 : i32, i32
  }
  func.func @transform_2(%arg0: i32) -> (i32, i32, i32) {
    %c0_i32 = arith.constant 0 : i32
    %c0_i32_0 = arith.constant 0 : i32
    %c0_i32_1 = arith.constant 0 : i32
    %c0_i32_2 = arith.constant 0 : i32
    return %c0_i32, %c0_i32_0, %c0_i32_1 : i32, i32, i32
  }
  func.func @transform_3(%arg0: i32) -> (i32, i32, i32) {
    %c0_i32 = arith.constant 0 : i32
    %c0_i32_0 = arith.constant 0 : i32
    %c0_i32_1 = arith.constant 0 : i32
    %c0_i32_2 = arith.constant 0 : i32
    return %c0_i32, %c0_i32_0, %c0_i32_1 : i32, i32, i32
  }
  func.func @transform_4(%arg0: i32) -> (i32, i32) {
    %c0_i32 = arith.constant 0 : i32
    %c0_i32_0 = arith.constant 0 : i32
    return %c0_i32, %arg0 : i32, i32
  }
}

</mosaic_0001>

<llo_original>
// kernel: iris_forward.1
$region0: #{iris_forward.1}
  #allocation0 [shape = 'u32[]', space=smem, size = 0x4, offset = 0x4, fixed_abs, tag = 'smem constant byte address 0x4 - core index']
  #allocation1 [shape = 'u32[144,128]{1,0:T(1,128)}', space=vmem, size = 0x12000, scoped, tag = 'internal scratch']
  %s0 = inlined_call_operand.vmem [shape: bf16[16,128], index: 0, kind: input, shape index: {}]
  %s1 = inlined_call_operand.vmem [shape: bf16[128,16], index: 1, kind: input, shape index: {}]
  %s2 = inlined_call_operand.vmem [shape: bf16[3,128,128], index: 2, kind: input, shape index: {}]
  %s3 = inlined_call_operand.vmem [shape: f32[4,128,1], index: 3, kind: input, shape index: {}]
  %s4 = inlined_call_operand.vmem [shape: f32[8,128], index: 4, kind: output, shape index: {}]
  %s5 = sld [smem:[#allocation0]]
  $region26: #{iris_forward.1} parent=0
    _
  %s7 = ssub.s32 1, %s5
  %s8 = scalar_select 0, %s7, %s5
  // Predicated region
  $region2: #{iris_forward.1} parent=0 // pred_check
    _
  $region3: #{iris_forward.1} parent=0 // pred_check_branch
    %10 = sbr.rel (0) target = $region5
  $region4: #{iris_forward.1} parent=0 // pred_region
    _
  $region5: #{iris_forward.1} parent=0 // pred_fallthru
    _
  // Predicated region
  $region6: #{iris_forward.1} parent=0 // pred_check
    _
  $region7: #{iris_forward.1} parent=0 // pred_check_branch
    %12 = sbr.rel (0) target = $region9
  $region8: #{iris_forward.1} parent=0 // pred_region
    _
  $region9: #{iris_forward.1} parent=0 // pred_fallthru
    _
  // Predicated region
  $region10: #{iris_forward.1} parent=0 // pred_check
    _
  $region11: #{iris_forward.1} parent=0 // pred_check_branch
    %14 = sbr.rel (0) target = $region13
  $region12: #{iris_forward.1} parent=0 // pred_region
    _
  $region13: #{iris_forward.1} parent=0 // pred_fallthru
    _
  // Predicated region
  $region14: #{iris_forward.1} parent=0 // pred_check
    _
  $region15: #{iris_forward.1} parent=0 // pred_check_branch
    %16 = sbr.rel (0) target = $region17
  $region16: #{iris_forward.1} parent=0 // pred_region
    _
  $region17: #{iris_forward.1} parent=0 // pred_fallthru
    _
  %v18 = vld [vmem:[%s1] sm:$0xf]
  %v19 = vld [vmem:[%s1 + $0x4] sm:$0xf]
  %v20 = vld [vmem:[%s1 + $0x8] sm:$0xf]
  %v21 = vld [vmem:[%s1 + $0xc] sm:$0xf]
  %v22 = vld [vmem:[%s1 + $0x10] sm:$0xf]
  %v23 = vld [vmem:[%s1 + $0x14] sm:$0xf]
  %v24 = vld [vmem:[%s1 + $0x18] sm:$0xf]
  %v25 = vld [vmem:[%s1 + $0x1c] sm:$0xf]
  %v26 = vld [vmem:[%s1 + $0x20] sm:$0xf]
  %v27 = vld [vmem:[%s1 + $0x24] sm:$0xf]
  %v28 = vld [vmem:[%s1 + $0x28] sm:$0xf]
  %v29 = vld [vmem:[%s1 + $0x2c] sm:$0xf]
  %v30 = vld [vmem:[%s1 + $0x30] sm:$0xf]
  %v31 = vld [vmem:[%s1 + $0x34] sm:$0xf]
  %v32 = vld [vmem:[%s1 + $0x38] sm:$0xf]
  %v33 = vld [vmem:[%s1 + $0x3c] sm:$0xf]
  %v34 = vld [vmem:[%s0] sm:$0xf]
  %v35 = vld [vmem:[%s0 + $0x4] sm:$0xf]
  %v36 = vld [vmem:[%s3] sm:$0xff]
  %v37 = vld [vmem:[%s3 + $0x8] sm:$0xff]
  %v38 = vld [vmem:[%s3 + $0x10] sm:$0xff]
  %v39 = vld [vmem:[%s3 + $0x18] sm:$0xff]
  %v40 = vld [vmem:[%s3 + $0x20] sm:$0xff]
  %v41 = vld [vmem:[%s3 + $0x28] sm:$0xff]
  %v42 = vld [vmem:[%s3 + $0x30] sm:$0xff]
  %v43 = vld [vmem:[%s3 + $0x38] sm:$0xff]
  %v44 = vld [vmem:[%s3 + $0x40] sm:$0xff]
  %v45 = vld [vmem:[%s3 + $0x48] sm:$0xff]
  %v46 = vld [vmem:[%s3 + $0x50] sm:$0xff]
  %v47 = vld [vmem:[%s3 + $0x58] sm:$0xff]
  %v48 = vld [vmem:[%s3 + $0x60] sm:$0xff]
  %v49 = vld [vmem:[%s3 + $0x68] sm:$0xff]
  %v50 = vld [vmem:[%s3 + $0x70] sm:$0xff]
  %v51 = vld [vmem:[%s3 + $0x78] sm:$0xff]
  %53 = vset.pattern.permute.xlu0 0
  %54 = vperm.xlu0 %53, %v36
  %v55 = vpop.permute.xlu0 %54
  %58 = vset.pattern.permute.xlu0 0
  %59 = vperm.xlu0 %58, %v37
  %v60 = vpop.permute.xlu0 %59
  %63 = vset.pattern.permute.xlu0 0
  %64 = vperm.xlu0 %63, %v38
  %v65 = vpop.permute.xlu0 %64
  %68 = vset.pattern.permute.xlu0 0
  %69 = vperm.xlu0 %68, %v39
  %v70 = vpop.permute.xlu0 %69
  %73 = vset.pattern.permute.xlu0 0
  %74 = vperm.xlu0 %73, %v40
  %v75 = vpop.permute.xlu0 %74
  %78 = vset.pattern.permute.xlu0 0
  %79 = vperm.xlu0 %78, %v41
  %v80 = vpop.permute.xlu0 %79
  %83 = vset.pattern.permute.xlu0 0
  %84 = vperm.xlu0 %83, %v42
  %v85 = vpop.permute.xlu0 %84
  %88 = vset.pattern.permute.xlu0 0
  %89 = vperm.xlu0 %88, %v43
  %v90 = vpop.permute.xlu0 %89
  %93 = vset.pattern.permute.xlu0 0
  %94 = vperm.xlu0 %93, %v44
  %v95 = vpop.permute.xlu0 %94
  %98 = vset.pattern.permute.xlu0 0
  %99 = vperm.xlu0 %98, %v45
  %v100 = vpop.permute.xlu0 %99
  %103 = vset.pattern.permute.xlu0 0
  %104 = vperm.xlu0 %103, %v46
  %v105 = vpop.permute.xlu0 %104
  %108 = vset.pattern.permute.xlu0 0
  %109 = vperm.xlu0 %108, %v47
  %v110 = vpop.permute.xlu0 %109
  %113 = vset.pattern.permute.xlu0 0
  %114 = vperm.xlu0 %113, %v48
  %v115 = vpop.permute.xlu0 %114
  %118 = vset.pattern.permute.xlu0 0
  %119 = vperm.xlu0 %118, %v49
  %v120 = vpop.permute.xlu0 %119
  %123 = vset.pattern.permute.xlu0 0
  %124 = vperm.xlu0 %123, %v50
  %v125 = vpop.permute.xlu0 %124
  %128 = vset.pattern.permute.xlu0 0
  %129 = vperm.xlu0 %128, %v51
  %v130 = vpop.permute.xlu0 %129
  %v148 = vunpack.c.l.b16 %v18
  %v149 = vunpack.c.l.b16 %v19
  %v150 = vunpack.c.l.b16 %v20
  %v151 = vunpack.c.l.b16 %v21
  %v152 = vunpack.c.l.b16 %v22
  %v153 = vunpack.c.l.b16 %v23
  %v154 = vunpack.c.l.b16 %v24
  %v155 = vunpack.c.l.b16 %v25
  %v156 = vunpack.c.l.b16 %v26
  %v157 = vunpack.c.l.b16 %v27
  %v158 = vunpack.c.l.b16 %v28
  %v159 = vunpack.c.l.b16 %v29
  %v160 = vunpack.c.l.b16 %v30
  %v161 = vunpack.c.l.b16 %v31
  %v162 = vunpack.c.l.b16 %v32
  %v163 = vunpack.c.l.b16 %v33
  %v164 = vpack.c.b16 %v149, %v148
  %v165 = vpack.c.b16 %v151, %v150
  %v166 = vpack.c.b16 %v153, %v152
  %v167 = vpack.c.b16 %v155, %v154
  %v168 = vpack.c.b16 %v157, %v156
  %v169 = vpack.c.b16 %v159, %v158
  %v170 = vpack.c.b16 %v161, %v160
  %v171 = vpack.c.b16 %v163, %v162
  %v174 = vunpack.c.l.b16 %v34
  %v175 = vunpack.c.l.b16 %v35
  %v176 = vpack.c.b16 %v175, %v174
  %vm178 = vcmask 130048
  %v180 = vsel %vm178, %v164, 0
  %v183 = vsel %vm178, %v165, 0
  %v186 = vsel %vm178, %v166, 0
  %v189 = vsel %vm178, %v167, 0
  %v192 = vsel %vm178, %v168, 0
  %v195 = vsel %vm178, %v169, 0
  %v198 = vsel %vm178, %v170, 0
  %v201 = vsel %vm178, %v171, 0
  %203 = vmatprep.subr.bf16.mxu0 0
  %204 = vmatpush1.bf16.msra.mxu0 %v176
  %205 = vmatprep.subr.bf16.mxu0 0
  %206 = vmatpush1.bf16.msra.mxu0 0
  %207 = vmatprep.subr.bf16.mxu0 0
  %208 = vmatpush1.bf16.msra.mxu0 0
  %209 = vmatprep.subr.bf16.mxu0 0
  %210 = vmatpush1.bf16.msra.mxu0 0
  %211 = vmatprep.subr.bf16.mxu0 0
  %212 = vmatpush1.bf16.msra.mxu0 0
  %213 = vmatprep.subr.bf16.mxu0 0
  %214 = vmatpush1.bf16.msra.mxu0 0
  %215 = vmatprep.subr.bf16.mxu0 0
  %216 = vmatpush1.bf16.msra.mxu0 0
  %217 = vmatprep.subr.bf16.mxu0 0
  %218 = vmatpush1.bf16.msra.mxu0 0
  %219 = vmatprep.subr.bf16.mxu0 0
  %220 = vmatpush1.bf16.msra.mxu0 0
  %221 = vmatprep.subr.bf16.mxu0 0
  %222 = vmatpush1.bf16.msra.mxu0 0
  %223 = vmatprep.subr.bf16.mxu0 0
  %224 = vmatpush1.bf16.msra.mxu0 0
  %225 = vmatprep.subr.bf16.mxu0 0
  %226 = vmatpush1.bf16.msra.mxu0 0
  %227 = vmatprep.subr.bf16.mxu0 0
  %228 = vmatpush1.bf16.msra.mxu0 0
  %229 = vmatprep.subr.bf16.mxu0 0
  %230 = vmatpush1.bf16.msra.mxu0 0
  %231 = vmatprep.subr.bf16.mxu0 0
  %232 = vmatpush1.bf16.msra.mxu0 0
  %233 = vmatprep.subr.bf16.mxu0 0
  %234 = vmatpush1.bf16.msra.mxu0 0
  %235 = vmatprep.mubr.bf16.mxu0 0
  %236 = vmatmul.mubr.bf16.gmra.mrb[0].mxu0 %v180
  %v237 = vpop.f32.mrb[0].mxu0
  %v238 = vadd.f32 %v55, %v237
  %v239 = vpop.f32.mrb[0].mxu0
  %v240 = vpop.f32.mrb[0].mxu0
  %v241 = vadd.f32 %v60, %v240
  %v242 = vpop.f32.mrb[0].mxu0
  %243 = vmatprep.mubr.bf16.mxu0 0
  %244 = vmatmul.mubr.bf16.gmra.mrb[0].mxu0 %v183
  %v245 = vpop.f32.mrb[0].mxu0
  %v246 = vadd.f32 %v65, %v245
  %v247 = vpop.f32.mrb[0].mxu0
  %v248 = vpop.f32.mrb[0].mxu0
  %v249 = vadd.f32 %v70, %v248
  %v250 = vpop.f32.mrb[0].mxu0
  %251 = vmatprep.mubr.bf16.mxu0 0
  %252 = vmatmul.mubr.bf16.gmra.mrb[0].mxu0 %v186
  %v253 = vpop.f32.mrb[0].mxu0
  %v254 = vadd.f32 %v75, %v253
  %v255 = vpop.f32.mrb[0].mxu0
  %v256 = vpop.f32.mrb[0].mxu0
  %v257 = vadd.f32 %v80, %v256
  %v258 = vpop.f32.mrb[0].mxu0
  %259 = vmatprep.mubr.bf16.mxu0 0
  %260 = vmatmul.mubr.bf16.gmra.mrb[0].mxu0 %v189
  %v261 = vpop.f32.mrb[0].mxu0
  %v262 = vadd.f32 %v85, %v261
  %v263 = vpop.f32.mrb[0].mxu0
  %v264 = vpop.f32.mrb[0].mxu0
  %v265 = vadd.f32 %v90, %v264
  %v266 = vpop.f32.mrb[0].mxu0
  %267 = vmatprep.mubr.bf16.mxu0 0
  %268 = vmatmul.mubr.bf16.gmra.mrb[0].mxu0 %v192
  %v269 = vpop.f32.mrb[0].mxu0
  %v270 = vadd.f32 %v95, %v269
  %v271 = vpop.f32.mrb[0].mxu0
  %v272 = vpop.f32.mrb[0].mxu0
  %v273 = vadd.f32 %v100, %v272
  %v274 = vpop.f32.mrb[0].mxu0
  %275 = vmatprep.mubr.bf16.mxu0 0
  %276 = vmatmul.mubr.bf16.gmra.mrb[0].mxu0 %v195
  %v277 = vpop.f32.mrb[0].mxu0
  %v278 = vadd.f32 %v105, %v277
  %v279 = vpop.f32.mrb[0].mxu0
  %v280 = vpop.f32.mrb[0].mxu0
  %v281 = vadd.f32 %v110, %v280
  %v282 = vpop.f32.mrb[0].mxu0
  %283 = vmatprep.mubr.bf16.mxu0 0
  %284 = vmatmul.mubr.bf16.gmra.mrb[0].mxu0 %v198
  %v285 = vpop.f32.mrb[0].mxu0
  %v286 = vadd.f32 %v115, %v285
  %v287 = vpop.f32.mrb[0].mxu0
  %v288 = vpop.f32.mrb[0].mxu0
  %v289 = vadd.f32 %v120, %v288
  %v290 = vpop.f32.mrb[0].mxu0
  %291 = vmatprep.mubr.bf16.mxu0 0
  %292 = vmatmul.mubr.bf16.gmra.mrb[0].mxu0 %v201
  %v293 = vpop.f32.mrb[0].mxu0
  %v294 = vadd.f32 %v125, %v293
  %v295 = vpop.f32.mrb[0].mxu0
  %v296 = vpop.f32.mrb[0].mxu0
  %v297 = vadd.f32 %v130, %v296
  %v298 = vpop.f32.mrb[0].mxu0
  %299 = vdwg.mxu0
  %v300 = vmax.f32 %v238, 0.0
  %v301 = vmax.f32 %v241, 0.0
  %v302 = vmax.f32 %v246, 0.0
  %v303 = vmax.f32 %v249, 0.0
  %v304 = vmax.f32 %v254, 0.0
  %v305 = vmax.f32 %v257, 0.0
  %v306 = vmax.f32 %v262, 0.0
  %v307 = vmax.f32 %v265, 0.0
  %v308 = vmax.f32 %v270, 0.0
  %v309 = vmax.f32 %v273, 0.0
  %v310 = vmax.f32 %v278, 0.0
  %v311 = vmax.f32 %v281, 0.0
  %v312 = vmax.f32 %v286, 0.0
  %v313 = vmax.f32 %v289, 0.0
  %v314 = vmax.f32 %v294, 0.0
  %v315 = vmax.f32 %v297, 0.0
  %v316 = vld [vmem:[%s2] sm:$0xf]
  %v317 = vld [vmem:[%s2 + $0x4] sm:$0xf]
  %v318 = vld [vmem:[%s2 + $0x8] sm:$0xf]
  %v319 = vld [vmem:[%s2 + $0xc] sm:$0xf]
  %v320 = vld [vmem:[%s2 + $0x10] sm:$0xf]
  %v321 = vld [vmem:[%s2 + $0x14] sm:$0xf]
  %v322 = vld [vmem:[%s2 + $0x18] sm:$0xf]
  %v323 = vld [vmem:[%s2 + $0x1c] sm:$0xf]
  %v324 = vld [vmem:[%s2 + $0x20] sm:$0xf]
  %v325 = vld [vmem:[%s2 + $0x24] sm:$0xf]
  %v326 = vld [vmem:[%s2 + $0x28] sm:$0xf]
  %v327 = vld [vmem:[%s2 + $0x2c] sm:$0xf]
  %v328 = vld [vmem:[%s2 + $0x30] sm:$0xf]
  %v329 = vld [vmem:[%s2 + $0x34] sm:$0xf]
  %v330 = vld [vmem:[%s2 + $0x38] sm:$0xf]
  %v331 = vld [vmem:[%s2 + $0x3c] sm:$0xf]
  %v332 = vpack.c.bf16 %v301, %v300
  %v333 = vpack.c.bf16 %v303, %v302
  %v334 = vpack.c.bf16 %v305, %v304
  %v335 = vpack.c.bf16 %v307, %v306
  %v336 = vpack.c.bf16 %v309, %v308
  %v337 = vpack.c.bf16 %v311, %v310
  %v338 = vpack.c.bf16 %v313, %v312
  %v339 = vpack.c.bf16 %v315, %v314
  %s340 = scalar_lea.vmem %s3, 128
  %v341 = vld [vmem:[%s340] sm:$0xff]
  %v342 = vld [vmem:[%s340 + $0x8] sm:$0xff]
  %v343 = vld [vmem:[%s340 + $0x10] sm:$0xff]
  %v344 = vld [vmem:[%s340 + $0x18] sm:$0xff]
  %v345 = vld [vmem:[%s340 + $0x20] sm:$0xff]
  %v346 = vld [vmem:[%s340 + $0x28] sm:$0xff]
  %v347 = vld [vmem:[%s340 + $0x30] sm:$0xff]
  %v348 = vld [vmem:[%s340 + $0x38] sm:$0xff]
  %v349 = vld [vmem:[%s340 + $0x40] sm:$0xff]
  %v350 = vld [vmem:[%s340 + $0x48] sm:$0xff]
  %v351 = vld [vmem:[%s340 + $0x50] sm:$0xff]
  %v352 = vld [vmem:[%s340 + $0x58] sm:$0xff]
  %v353 = vld [vmem:[%s340 + $0x60] sm:$0xff]
  %v354 = vld [vmem:[%s340 + $0x68] sm:$0xff]
  %v355 = vld [vmem:[%s340 + $0x70] sm:$0xff]
  %v356 = vld [vmem:[%s340 + $0x78] sm:$0xff]
  %358 = vset.pattern.permute.xlu0 0
  %359 = vperm.xlu0 %358, %v341
  %v360 = vpop.permute.xlu0 %359
  %363 = vset.pattern.permute.xlu0 0
  %364 = vperm.xlu0 %363, %v342
  %v365 = vpop.permute.xlu0 %364
  %368 = vset.pattern.permute.xlu0 0
  %369 = vperm.xlu0 %368, %v343
  %v370 = vpop.permute.xlu0 %369
  %373 = vset.pattern.permute.xlu0 0
  %374 = vperm.xlu0 %373, %v344
  %v375 = vpop.permute.xlu0 %374
  %378 = vset.pattern.permute.xlu0 0
  %379 = vperm.xlu0 %378, %v345
  %v380 = vpop.permute.xlu0 %379
  %383 = vset.pattern.permute.xlu0 0
  %384 = vperm.xlu0 %383, %v346
  %v385 = vpop.permute.xlu0 %384
  %388 = vset.pattern.permute.xlu0 0
  %389 = vperm.xlu0 %388, %v347
  %v390 = vpop.permute.xlu0 %389
  %393 = vset.pattern.permute.xlu0 0
  %394 = vperm.xlu0 %393, %v348
  %v395 = vpop.permute.xlu0 %394
  %398 = vset.pattern.permute.xlu0 0
  %399 = vperm.xlu0 %398, %v349
  %v400 = vpop.permute.xlu0 %399
  %403 = vset.pattern.permute.xlu0 0
  %404 = vperm.xlu0 %403, %v350
  %v405 = vpop.permute.xlu0 %404
  %408 = vset.pattern.permute.xlu0 0
  %409 = vperm.xlu0 %408, %v351
  %v410 = vpop.permute.xlu0 %409
  %413 = vset.pattern.permute.xlu0 0
  %414 = vperm.xlu0 %413, %v352
  %v415 = vpop.permute.xlu0 %414
  %418 = vset.pattern.permute.xlu0 0
  %419 = vperm.xlu0 %418, %v353
  %v420 = vpop.permute.xlu0 %419
  %423 = vset.pattern.permute.xlu0 0
  %424 = vperm.xlu0 %423, %v354
  %v425 = vpop.permute.xlu0 %424
  %428 = vset.pattern.permute.xlu0 0
  %429 = vperm.xlu0 %428, %v355
  %v430 = vpop.permute.xlu0 %429
  %433 = vset.pattern.permute.xlu0 0
  %434 = vperm.xlu0 %433, %v356
  %v435 = vpop.permute.xlu0 %434
  %v453 = vunpack.c.l.b16 %v316
  %v454 = vunpack.c.l.b16 %v317
  %v455 = vunpack.c.l.b16 %v318
  %v456 = vunpack.c.l.b16 %v319
  %v457 = vunpack.c.l.b16 %v320
  %v458 = vunpack.c.l.b16 %v321
  %v459 = vunpack.c.l.b16 %v322
  %v460 = vunpack.c.l.b16 %v323
  %v461 = vunpack.c.l.b16 %v324
  %v462 = vunpack.c.l.b16 %v325
  %v463 = vunpack.c.l.b16 %v326
  %v464 = vunpack.c.l.b16 %v327
  %v465 = vunpack.c.l.b16 %v328
  %v466 = vunpack.c.l.b16 %v329
  %v467 = vunpack.c.l.b16 %v330
  %v468 = vunpack.c.l.b16 %v331
  %v469 = vpack.c.b16 %v454, %v453
  %v470 = vpack.c.b16 %v456, %v455
  %v471 = vpack.c.b16 %v458, %v457
  %v472 = vpack.c.b16 %v460, %v459
  %v473 = vpack.c.b16 %v462, %v461
  %v474 = vpack.c.b16 %v464, %v463
  %v475 = vpack.c.b16 %v466, %v465
  %v476 = vpack.c.b16 %v468, %v467
  %485 = vmatprep.subr.bf16.mxu0 0
  %486 = vmatpush1.bf16.msra.mxu0 %v332
  %487 = vmatprep.subr.bf16.mxu0 0
  %488 = vmatpush1.bf16.msra.mxu0 %v333
  %489 = vmatprep.subr.bf16.mxu0 0
  %490 = vmatpush1.bf16.msra.mxu0 %v334
  %491 = vmatprep.subr.bf16.mxu0 0
  %492 = vmatpush1.bf16.msra.mxu0 %v335
  %493 = vmatprep.subr.bf16.mxu0 0
  %494 = vmatpush1.bf16.msra.mxu0 %v336
  %495 = vmatprep.subr.bf16.mxu0 0
  %496 = vmatpush1.bf16.msra.mxu0 %v337
  %497 = vmatprep.subr.bf16.mxu0 0
  %498 = vmatpush1.bf16.msra.mxu0 %v338
  %499 = vmatprep.subr.bf16.mxu0 0
  %500 = vmatpush1.bf16.msra.mxu0 %v339
  %501 = vmatprep.subr.bf16.mxu0 0
  %502 = vmatpush1.bf16.msra.mxu0 0
  %503 = vmatprep.subr.bf16.mxu0 0
  %504 = vmatpush1.bf16.msra.mxu0 0
  %505 = vmatprep.subr.bf16.mxu0 0
  %506 = vmatpush1.bf16.msra.mxu0 0
  %507 = vmatprep.subr.bf16.mxu0 0
  %508 = vmatpush1.bf16.msra.mxu0 0
  %509 = vmatprep.subr.bf16.mxu0 0
  %510 = vmatpush1.bf16.msra.mxu0 0
  %511 = vmatprep.subr.bf16.mxu0 0
  %512 = vmatpush1.bf16.msra.mxu0 0
  %513 = vmatprep.subr.bf16.mxu0 0
  %514 = vmatpush1.bf16.msra.mxu0 0
  %515 = vmatprep.subr.bf16.mxu0 0
  %516 = vmatpush1.bf16.msra.mxu0 0
  %517 = vmatprep.mubr.bf16.mxu0 0
  %518 = vmatmul.mubr.bf16.gmra.mrb[0].mxu0 %v469
  %v519 = vpop.f32.mrb[0].mxu0
  %v520 = vadd.f32 %v360, %v519
  %v521 = vpop.f32.mrb[0].mxu0
  %v522 = vpop.f32.mrb[0].mxu0
  %v523 = vadd.f32 %v365, %v522
  %v524 = vpop.f32.mrb[0].mxu0
  %525 = vmatprep.mubr.bf16.mxu0 0
  %526 = vmatmul.mubr.bf16.gmra.mrb[0].mxu0 %v470
  %v527 = vpop.f32.mrb[0].mxu0
  %v528 = vadd.f32 %v370, %v527
  %v529 = vpop.f32.mrb[0].mxu0
  %v530 = vpop.f32.mrb[0].mxu0
  %v531 = vadd.f32 %v375, %v530
  %v532 = vpop.f32.mrb[0].mxu0
  %533 = vmatprep.mubr.bf16.mxu0 0
  %534 = vmatmul.mubr.bf16.gmra.mrb[0].mxu0 %v471
  %v535 = vpop.f32.mrb[0].mxu0
  %v536 = vadd.f32 %v380, %v535
  %v537 = vpop.f32.mrb[0].mxu0
  %v538 = vpop.f32.mrb[0].mxu0
  %v539 = vadd.f32 %v385, %v538
  %v540 = vpop.f32.mrb[0].mxu0
  %541 = vmatprep.mubr.bf16.mxu0 0
  %542 = vmatmul.mubr.bf16.gmra.mrb[0].mxu0 %v472
  %v543 = vpop.f32.mrb[0].mxu0
  %v544 = vadd.f32 %v390, %v543
  %v545 = vpop.f32.mrb[0].mxu0
  %v546 = vpop.f32.mrb[0].mxu0
  %v547 = vadd.f32 %v395, %v546
  %v548 = vpop.f32.mrb[0].mxu0
  %549 = vmatprep.mubr.bf16.mxu0 0
  %550 = vmatmul.mubr.bf16.gmra.mrb[0].mxu0 %v473
  %v551 = vpop.f32.mrb[0].mxu0
  %v552 = vadd.f32 %v400, %v551
  %v553 = vpop.f32.mrb[0].mxu0
  %v554 = vpop.f32.mrb[0].mxu0
  %v555 = vadd.f32 %v405, %v554
  %v556 = vpop.f32.mrb[0].mxu0
  %557 = vmatprep.mubr.bf16.mxu0 0
  %558 = vmatmul.mubr.bf16.gmra.mrb[0].mxu0 %v474
  %v559 = vpop.f32.mrb[0].mxu0
  %v560 = vadd.f32 %v410, %v559
  %v561 = vpop.f32.mrb[0].mxu0
  %v562 = vpop.f32.mrb[0].mxu0
  %v563 = vadd.f32 %v415, %v562
  %v564 = vpop.f32.mrb[0].mxu0
  %565 = vmatprep.mubr.bf16.mxu0 0
  %566 = vmatmul.mubr.bf16.gmra.mrb[0].mxu0 %v475
  %v567 = vpop.f32.mrb[0].mxu0
  %v568 = vadd.f32 %v420, %v567
  %v569 = vpop.f32.mrb[0].mxu0
  %v570 = vpop.f32.mrb[0].mxu0
  %v571 = vadd.f32 %v425, %v570
  %v572 = vpop.f32.mrb[0].mxu0
  %573 = vmatprep.mubr.bf16.mxu0 0
  %574 = vmatmul.mubr.bf16.gmra.mrb[0].mxu0 %v476
  %v575 = vpop.f32.mrb[0].mxu0
  %v576 = vadd.f32 %v430, %v575
  %v577 = vpop.f32.mrb[0].mxu0
  %v578 = vpop.f32.mrb[0].mxu0
  %v579 = vadd.f32 %v435, %v578
  %v580 = vpop.f32.mrb[0].mxu0
  %581 = vdwg.mxu0
  %v582 = vmax.f32 %v520, 0.0
  %v583 = vmax.f32 %v523, 0.0
  %v584 = vmax.f32 %v528, 0.0
  %v585 = vmax.f32 %v531, 0.0
  %v586 = vmax.f32 %v536, 0.0
  %v587 = vmax.f32 %v539, 0.0
  %v588 = vmax.f32 %v544, 0.0
  %v589 = vmax.f32 %v547, 0.0
  %v590 = vmax.f32 %v552, 0.0
  %v591 = vmax.f32 %v555, 0.0
  %v592 = vmax.f32 %v560, 0.0
  %v593 = vmax.f32 %v563, 0.0
  %v594 = vmax.f32 %v568, 0.0
  %v595 = vmax.f32 %v571, 0.0
  %v596 = vmax.f32 %v576, 0.0
  %v597 = vmax.f32 %v579, 0.0
  %s598 = scalar_lea.vmem %s2, 64
  %v599 = vld [vmem:[%s598] sm:$0xf]
  %v600 = vld [vmem:[%s598 + $0x4] sm:$0xf]
  %v601 = vld [vmem:[%s598 + $0x8] sm:$0xf]
  %v602 = vld [vmem:[%s598 + $0xc] sm:$0xf]
  %v603 = vld [vmem:[%s598 + $0x10] sm:$0xf]
  %v604 = vld [vmem:[%s598 + $0x14] sm:$0xf]
  %v605 = vld [vmem:[%s598 + $0x18] sm:$0xf]
  %v606 = vld [vmem:[%s598 + $0x1c] sm:$0xf]
  %v607 = vld [vmem:[%s598 + $0x20] sm:$0xf]
  %v608 = vld [vmem:[%s598 + $0x24] sm:$0xf]
  %v609 = vld [vmem:[%s598 + $0x28] sm:$0xf]
  %v610 = vld [vmem:[%s598 + $0x2c] sm:$0xf]
  %v611 = vld [vmem:[%s598 + $0x30] sm:$0xf]
  %v612 = vld [vmem:[%s598 + $0x34] sm:$0xf]
  %v613 = vld [vmem:[%s598 + $0x38] sm:$0xf]
  %v614 = vld [vmem:[%s598 + $0x3c] sm:$0xf]
  %v615 = vpack.c.bf16 %v583, %v582
  %v616 = vpack.c.bf16 %v585, %v584
  %v617 = vpack.c.bf16 %v587, %v586
  %v618 = vpack.c.bf16 %v589, %v588
  %v619 = vpack.c.bf16 %v591, %v590
  %v620 = vpack.c.bf16 %v593, %v592
  %v621 = vpack.c.bf16 %v595, %v594
  %v622 = vpack.c.bf16 %v597, %v596
  %s623 = scalar_lea.vmem %s3, 256
  %v624 = vld [vmem:[%s623] sm:$0xff]
  %v625 = vld [vmem:[%s623 + $0x8] sm:$0xff]
  %v626 = vld [vmem:[%s623 + $0x10] sm:$0xff]
  %v627 = vld [vmem:[%s623 + $0x18] sm:$0xff]
  %v628 = vld [vmem:[%s623 + $0x20] sm:$0xff]
  %v629 = vld [vmem:[%s623 + $0x28] sm:$0xff]
  %v630 = vld [vmem:[%s623 + $0x30] sm:$0xff]
  %v631 = vld [vmem:[%s623 + $0x38] sm:$0xff]
  %v632 = vld [vmem:[%s623 + $0x40] sm:$0xff]
  %v633 = vld [vmem:[%s623 + $0x48] sm:$0xff]
  %v634 = vld [vmem:[%s623 + $0x50] sm:$0xff]
  %v635 = vld [vmem:[%s623 + $0x58] sm:$0xff]
  %v636 = vld [vmem:[%s623 + $0x60] sm:$0xff]
  %v637 = vld [vmem:[%s623 + $0x68] sm:$0xff]
  %v638 = vld [vmem:[%s623 + $0x70] sm:$0xff]
  %v639 = vld [vmem:[%s623 + $0x78] sm:$0xff]
  %641 = vset.pattern.permute.xlu0 0
  %642 = vperm.xlu0 %641, %v624
  %v643 = vpop.permute.xlu0 %642
  %646 = vset.pattern.permute.xlu0 0
  %647 = vperm.xlu0 %646, %v625
  %v648 = vpop.permute.xlu0 %647
  %651 = vset.pattern.permute.xlu0 0
  %652 = vperm.xlu0 %651, %v626
  %v653 = vpop.permute.xlu0 %652
  %656 = vset.pattern.permute.xlu0 0
  %657 = vperm.xlu0 %656, %v627
  %v658 = vpop.permute.xlu0 %657
  %661 = vset.pattern.permute.xlu0 0
  %662 = vperm.xlu0 %661, %v628
  %v663 = vpop.permute.xlu0 %662
  %666 = vset.pattern.permute.xlu0 0
  %667 = vperm.xlu0 %666, %v629
  %v668 = vpop.permute.xlu0 %667
  %671 = vset.pattern.permute.xlu0 0
  %672 = vperm.xlu0 %671, %v630
  %v673 = vpop.permute.xlu0 %672
  %676 = vset.pattern.permute.xlu0 0
  %677 = vperm.xlu0 %676, %v631
  %v678 = vpop.permute.xlu0 %677
  %681 = vset.pattern.permute.xlu0 0
  %682 = vperm.xlu0 %681, %v632
  %v683 = vpop.permute.xlu0 %682
  %686 = vset.pattern.permute.xlu0 0
  %687 = vperm.xlu0 %686, %v633
  %v688 = vpop.permute.xlu0 %687
  %691 = vset.pattern.permute.xlu0 0
  %692 = vperm.xlu0 %691, %v634
  %v693 = vpop.permute.xlu0 %692
  %696 = vset.pattern.permute.xlu0 0
  %697 = vperm.xlu0 %696, %v635
  %v698 = vpop.permute.xlu0 %697
  %701 = vset.pattern.permute.xlu0 0
  %702 = vperm.xlu0 %701, %v636
  %v703 = vpop.permute.xlu0 %702
  %706 = vset.pattern.permute.xlu0 0
  %707 = vperm.xlu0 %706, %v637
  %v708 = vpop.permute.xlu0 %707
  %711 = vset.pattern.permute.xlu0 0
  %712 = vperm.xlu0 %711, %v638
  %v713 = vpop.permute.xlu0 %712
  %716 = vset.pattern.permute.xlu0 0
  %717 = vperm.xlu0 %716, %v639
  %v718 = vpop.permute.xlu0 %717
  %v736 = vunpack.c.l.b16 %v599
  %v737 = vunpack.c.l.b16 %v600
  %v738 = vunpack.c.l.b16 %v601
  %v739 = vunpack.c.l.b16 %v602
  %v740 = vunpack.c.l.b16 %v603
  %v741 = vunpack.c.l.b16 %v604
  %v742 = vunpack.c.l.b16 %v605
  %v743 = vunpack.c.l.b16 %v606
  %v744 = vunpack.c.l.b16 %v607
  %v745 = vunpack.c.l.b16 %v608
  %v746 = vunpack.c.l.b16 %v609
  %v747 = vunpack.c.l.b16 %v610
  %v748 = vunpack.c.l.b16 %v611
  %v749 = vunpack.c.l.b16 %v612
  %v750 = vunpack.c.l.b16 %v613
  %v751 = vunpack.c.l.b16 %v614
  %v752 = vpack.c.b16 %v737, %v736
  %v753 = vpack.c.b16 %v739, %v738
  %v754 = vpack.c.b16 %v741, %v740
  %v755 = vpack.c.b16 %v743, %v742
  %v756 = vpack.c.b16 %v745, %v744
  %v757 = vpack.c.b16 %v747, %v746
  %v758 = vpack.c.b16 %v749, %v748
  %v759 = vpack.c.b16 %v751, %v750
  %768 = vmatprep.subr.bf16.mxu0 0
  %769 = vmatpush1.bf16.msra.mxu0 %v615
  %770 = vmatprep.subr.bf16.mxu0 0
  %771 = vmatpush1.bf16.msra.mxu0 %v616
  %772 = vmatprep.subr.bf16.mxu0 0
  %773 = vmatpush1.bf16.msra.mxu0 %v617
  %774 = vmatprep.subr.bf16.mxu0 0
  %775 = vmatpush1.bf16.msra.mxu0 %v618
  %776 = vmatprep.subr.bf16.mxu0 0
  %777 = vmatpush1.bf16.msra.mxu0 %v619
  %778 = vmatprep.subr.bf16.mxu0 0
  %779 = vmatpush1.bf16.msra.mxu0 %v620
  %780 = vmatprep.subr.bf16.mxu0 0
  %781 = vmatpush1.bf16.msra.mxu0 %v621
  %782 = vmatprep.subr.bf16.mxu0 0
  %783 = vmatpush1.bf16.msra.mxu0 %v622
  %784 = vmatprep.subr.bf16.mxu0 0
  %785 = vmatpush1.bf16.msra.mxu0 0
  %786 = vmatprep.subr.bf16.mxu0 0
  %787 = vmatpush1.bf16.msra.mxu0 0
  %788 = vmatprep.subr.bf16.mxu0 0
  %789 = vmatpush1.bf16.msra.mxu0 0
  %790 = vmatprep.subr.bf16.mxu0 0
  %791 = vmatpush1.bf16.msra.mxu0 0
  %792 = vmatprep.subr.bf16.mxu0 0
  %793 = vmatpush1.bf16.msra.mxu0 0
  %794 = vmatprep.subr.bf16.mxu0 0
  %795 = vmatpush1.bf16.msra.mxu0 0
  %796 = vmatprep.subr.bf16.mxu0 0
  %797 = vmatpush1.bf16.msra.mxu0 0
  %798 = vmatprep.subr.bf16.mxu0 0
  %799 = vmatpush1.bf16.msra.mxu0 0
  %800 = vmatprep.mubr.bf16.mxu0 0
  %801 = vmatmul.mubr.bf16.gmra.mrb[0].mxu0 %v752
  %v802 = vpop.f32.mrb[0].mxu0
  %v803 = vadd.f32 %v643, %v802
  %v804 = vpop.f32.mrb[0].mxu0
  %v805 = vpop.f32.mrb[0].mxu0
  %v806 = vadd.f32 %v648, %v805
  %v807 = vpop.f32.mrb[0].mxu0
  %808 = vmatprep.mubr.bf16.mxu0 0
  %809 = vmatmul.mubr.bf16.gmra.mrb[0].mxu0 %v753
  %v810 = vpop.f32.mrb[0].mxu0
  %v811 = vadd.f32 %v653, %v810
  %v812 = vpop.f32.mrb[0].mxu0
  %v813 = vpop.f32.mrb[0].mxu0
  %v814 = vadd.f32 %v658, %v813
  %v815 = vpop.f32.mrb[0].mxu0
  %816 = vmatprep.mubr.bf16.mxu0 0
  %817 = vmatmul.mubr.bf16.gmra.mrb[0].mxu0 %v754
  %v818 = vpop.f32.mrb[0].mxu0
  %v819 = vadd.f32 %v663, %v818
  %v820 = vpop.f32.mrb[0].mxu0
  %v821 = vpop.f32.mrb[0].mxu0
  %v822 = vadd.f32 %v668, %v821
  %v823 = vpop.f32.mrb[0].mxu0
  %824 = vmatprep.mubr.bf16.mxu0 0
  %825 = vmatmul.mubr.bf16.gmra.mrb[0].mxu0 %v755
  %v826 = vpop.f32.mrb[0].mxu0
  %v827 = vadd.f32 %v673, %v826
  %v828 = vpop.f32.mrb[0].mxu0
  %v829 = vpop.f32.mrb[0].mxu0
  %v830 = vadd.f32 %v678, %v829
  %v831 = vpop.f32.mrb[0].mxu0
  %832 = vmatprep.mubr.bf16.mxu0 0
  %833 = vmatmul.mubr.bf16.gmra.mrb[0].mxu0 %v756
  %v834 = vpop.f32.mrb[0].mxu0
  %v835 = vadd.f32 %v683, %v834
  %v836 = vpop.f32.mrb[0].mxu0
  %v837 = vpop.f32.mrb[0].mxu0
  %v838 = vadd.f32 %v688, %v837
  %v839 = vpop.f32.mrb[0].mxu0
  %840 = vmatprep.mubr.bf16.mxu0 0
  %841 = vmatmul.mubr.bf16.gmra.mrb[0].mxu0 %v757
  %v842 = vpop.f32.mrb[0].mxu0
  %v843 = vadd.f32 %v693, %v842
  %v844 = vpop.f32.mrb[0].mxu0
  %v845 = vpop.f32.mrb[0].mxu0
  %v846 = vadd.f32 %v698, %v845
  %v847 = vpop.f32.mrb[0].mxu0
  %848 = vmatprep.mubr.bf16.mxu0 0
  %849 = vmatmul.mubr.bf16.gmra.mrb[0].mxu0 %v758
  %v850 = vpop.f32.mrb[0].mxu0
  %v851 = vadd.f32 %v703, %v850
  %v852 = vpop.f32.mrb[0].mxu0
  %v853 = vpop.f32.mrb[0].mxu0
  %v854 = vadd.f32 %v708, %v853
  %v855 = vpop.f32.mrb[0].mxu0
  %856 = vmatprep.mubr.bf16.mxu0 0
  %857 = vmatmul.mubr.bf16.gmra.mrb[0].mxu0 %v759
  %v858 = vpop.f32.mrb[0].mxu0
  %v859 = vadd.f32 %v713, %v858
  %v860 = vpop.f32.mrb[0].mxu0
  %v861 = vpop.f32.mrb[0].mxu0
  %v862 = vadd.f32 %v718, %v861
  %v863 = vpop.f32.mrb[0].mxu0
  %864 = vdwg.mxu0
  %v865 = vmax.f32 %v803, 0.0
  %v866 = vmax.f32 %v806, 0.0
  %v867 = vmax.f32 %v811, 0.0
  %v868 = vmax.f32 %v814, 0.0
  %v869 = vmax.f32 %v819, 0.0
  %v870 = vmax.f32 %v822, 0.0
  %v871 = vmax.f32 %v827, 0.0
  %v872 = vmax.f32 %v830, 0.0
  %v873 = vmax.f32 %v835, 0.0
  %v874 = vmax.f32 %v838, 0.0
  %v875 = vmax.f32 %v843, 0.0
  %v876 = vmax.f32 %v846, 0.0
  %v877 = vmax.f32 %v851, 0.0
  %v878 = vmax.f32 %v854, 0.0
  %v879 = vmax.f32 %v859, 0.0
  %v880 = vmax.f32 %v862, 0.0
  %s881 = scalar_lea.vmem %s2, 128
  %v882 = vld [vmem:[%s881] sm:$0xf]
  %v883 = vpack.c.bf16 %v866, %v865
  %v884 = vpack.c.bf16 %v868, %v867
  %v885 = vpack.c.bf16 %v870, %v869
  %v886 = vpack.c.bf16 %v872, %v871
  %v887 = vpack.c.bf16 %v874, %v873
  %v888 = vpack.c.bf16 %v876, %v875
  %v889 = vpack.c.bf16 %v878, %v877
  %v890 = vpack.c.bf16 %v880, %v879
  %s891 = scalar_lea.vmem %s3, 384
  %v892 = vld [vmem:[%s891] sm:$0xff]
  %894 = vset.pattern.permute.xlu0 0
  %895 = vperm.xlu0 %894, %v892
  %v896 = vpop.permute.xlu0 %895
  %898 = vmatprep.subr.bf16.mxu0 0
  %899 = vmatpush1.bf16.msra.mxu0 %v883
  %900 = vmatprep.subr.bf16.mxu0 0
  %901 = vmatpush1.bf16.msra.mxu0 %v884
  %902 = vmatprep.subr.bf16.mxu0 0
  %903 = vmatpush1.bf16.msra.mxu0 %v885
  %904 = vmatprep.subr.bf16.mxu0 0
  %905 = vmatpush1.bf16.msra.mxu0 %v886
  %906 = vmatprep.subr.bf16.mxu0 0
  %907 = vmatpush1.bf16.msra.mxu0 %v887
  %908 = vmatprep.subr.bf16.mxu0 0
  %909 = vmatpush1.bf16.msra.mxu0 %v888
  %910 = vmatprep.subr.bf16.mxu0 0
  %911 = vmatpush1.bf16.msra.mxu0 %v889
  %912 = vmatprep.subr.bf16.mxu0 0
  %913 = vmatpush1.bf16.msra.mxu0 %v890
  %914 = vmatprep.subr.bf16.mxu0 0
  %915 = vmatpush1.bf16.msra.mxu0 0
  %916 = vmatprep.subr.bf16.mxu0 0
  %917 = vmatpush1.bf16.msra.mxu0 0
  %918 = vmatprep.subr.bf16.mxu0 0
  %919 = vmatpush1.bf16.msra.mxu0 0
  %920 = vmatprep.subr.bf16.mxu0 0
  %921 = vmatpush1.bf16.msra.mxu0 0
  %922 = vmatprep.subr.bf16.mxu0 0
  %923 = vmatpush1.bf16.msra.mxu0 0
  %924 = vmatprep.subr.bf16.mxu0 0
  %925 = vmatpush1.bf16.msra.mxu0 0
  %926 = vmatprep.subr.bf16.mxu0 0
  %927 = vmatpush1.bf16.msra.mxu0 0
  %928 = vmatprep.subr.bf16.mxu0 0
  %929 = vmatpush1.bf16.msra.mxu0 0
  %930 = vmatprep.mubr.bf16.mxu0 0
  %931 = vmatmul.mubr.bf16.gmra.mrb[0].mxu0 %v882
  %v932 = vpop.f32.mrb[0].mxu0
  %v933 = vadd.f32 %v896, %v932
  %v934 = vpop.f32.mrb[0].mxu0
  %v935 = vpop.f32.mrb[0].mxu0
  %v936 = vpop.f32.mrb[0].mxu0
  %937 = vdwg.mxu0
  %938 = vst [vmem:[%s4] sm:$0xff] %v933
  // Predicated region
  $region18: #{iris_forward.1} parent=0 // pred_check
    _
  $region19: #{iris_forward.1} parent=0 // pred_check_branch
    %940 = sbr.rel (0) target = $region21
  $region20: #{iris_forward.1} parent=0 // pred_region
    _
  $region21: #{iris_forward.1} parent=0 // pred_fallthru
    _
  // Predicated region
  $region22: #{iris_forward.1} parent=0 // pred_check
    _
  $region23: #{iris_forward.1} parent=0 // pred_check_branch
    %942 = sbr.rel (0) target = $region25
  $region24: #{iris_forward.1} parent=0 // pred_region
    _
  $region25: #{iris_forward.1} parent=0 // pred_fallthru
    _

</llo_original>
